<compile_context>
chip_gen: v7x
topology: tpu7x:2x2x1
jax: 0.10.0
libtpu: 0.0.40
codegen_flags: <defaults>
</compile_context>

<pallas_src>
import functools

import jax
import jax.numpy as jnp
from jax import lax
from jax.experimental import pallas as pl
from jax.experimental.pallas import tpu as pltpu

MID = 128            # hidden width fixed by the module
BN_EPS = 1e-3
LANE = 128
SUB = 8
MAX_TILE_ROWS = 32768
FUSED_MAX_ROWS = 4096


def _round_up(n, m):
    return (n + m - 1) // m * m


def _round_down(n, m):
    return max(m, n // m * m)


def _vmem_budget_bytes():
    """Generation-aware VMEM budget (v7x has 64 MiB, v5e/v6e 128 MiB)."""
    cap = 64 * 1024 * 1024
    try:
        info = pltpu.get_tpu_info()
        cap = int(getattr(info, "vmem_capacity_bytes", cap)) or cap
    except Exception:
        pass
    budget = min(int(cap * 0.8), cap - 16 * 1024 * 1024)
    return max(budget, 16 * 1024 * 1024)


# --------------------------------------------------------------------------- #
# Kernels
# --------------------------------------------------------------------------- #
def _stats_kernel(x_ref, w1_ref, sumx_ref, sumg2_ref, *, nt_total):
    """Phase 1: accumulate sum(x) and sum((x @ w1)^2) over all valid row tiles."""
    c = pl.program_id(0)          # core-split index (parallel)
    i = pl.program_id(1)          # tile index within split (arbitrary/reduction)

    @pl.when(i == 0)
    def _init():
        sumx_ref[...] = jnp.zeros_like(sumx_ref)
        sumg2_ref[...] = jnp.zeros_like(sumg2_ref)

    # Guard: with an odd total tile count the last step of split 1 is a duplicate
    # (its x index_map is clamped); skip its accumulation.
    @pl.when(c * pl.num_programs(1) + i < nt_total)
    def _accum():
        x = x_ref[...]                                    # (tm, C) f32
        tm = x.shape[0]
        ones = jnp.ones((SUB, tm), jnp.float32)           # MXU row-sum operand
        g = jnp.dot(x, w1_ref[...], preferred_element_type=jnp.float32)  # (tm, MID)
        # Row sums via MXU (all SUB output rows are identical copies of the sum).
        sumx_ref[...] += jnp.dot(ones, x, preferred_element_type=jnp.float32)[None]
        sumg2_ref[...] += jnp.dot(ones, g * g,
                                  preferred_element_type=jnp.float32)[None]


def _mlp_kernel(x_ref, w1_ref, t_ref, w2_ref, b2_ref, o_ref, *, compute_dtype):
    """Phase 2: (packed) fc1 with BN scale folded into w1 -> +shift -> ReLU -> fc2."""
    x = x_ref[...].astype(compute_dtype)
    h = jnp.dot(x, w1_ref[...], preferred_element_type=jnp.float32)
    h = jnp.maximum(h + t_ref[...], 0.0)
    y = jnp.dot(h.astype(compute_dtype), w2_ref[...],
                preferred_element_type=jnp.float32)
    o_ref[...] = (y + b2_ref[...]).astype(o_ref.dtype)


def _fused_kernel(x_ref, w1_ref, gamma_ref, beta_ref, w2_ref, b2_ref, o_ref, *,
                  n_rows):
    """Single-call path for small N: fc1 -> batch stats -> BN -> ReLU -> fc2."""
    x = x_ref[...]                                                    # (Np, C) f32
    g = jnp.dot(x, w1_ref[...], preferred_element_type=jnp.float32)  # (Np, MID)
    inv_n = 1.0 / float(n_rows)
    # Zero-padded rows contribute 0 to both sums; divide by the true row count.
    mean_g = jnp.sum(g, axis=0, keepdims=True) * inv_n
    var = jnp.maximum(jnp.sum(g * g, axis=0, keepdims=True) * inv_n
                      - mean_g * mean_g, 0.0)
    s = gamma_ref[...] * lax.rsqrt(var + BN_EPS)
    t = beta_ref[...] - mean_g * s            # fc1 bias cancels under BN
    h = jnp.maximum(g * s + t, 0.0)
    y = jnp.dot(h, w2_ref[...], preferred_element_type=jnp.float32) + b2_ref[...]
    o_ref[...] = y.astype(o_ref.dtype)


# --------------------------------------------------------------------------- #
# Wrapper
# --------------------------------------------------------------------------- #
@functools.partial(jax.jit,
                   static_argnames=("compute_dtype", "tile_rows", "fused_rows"))
def reconstruct_decoder_mlp(x, params, *, compute_dtype=jnp.bfloat16,
                            tile_rows=None, fused_rows=FUSED_MAX_ROWS):
    """x: (B, L, C) float32 -> (B, L, out_dim) float32."""
    B, L, C = x.shape
    N = B * L
    w1 = params["w1"].astype(jnp.float32)       # (C, MID); b1 cancels under BN
    gamma, beta = params["gamma"], params["beta"]
    w2, b2 = params["w2"], params["b2"]
    out_dim = w2.shape[1]

    x2d = x.reshape(N, C).astype(jnp.float32)
    budget = _vmem_budget_bytes()

    # ---------------- Fused single-call path (small N) ----------------------
    n_pad_f = _round_up(N, SUB)
    if n_pad_f <= fused_rows:
        xf = jnp.pad(x2d, ((0, n_pad_f - N), (0, 0))) if n_pad_f != N else x2d
        const = lambda i: (0, 0)
        y = pl.pallas_call(
            functools.partial(_fused_kernel, n_rows=N),
            out_shape=jax.ShapeDtypeStruct((n_pad_f, out_dim), jnp.float32),
            grid=(1,),
            in_specs=[
                pl.BlockSpec((n_pad_f, C), const),
                pl.BlockSpec((C, MID), const),
                pl.BlockSpec((1, MID), const),
                pl.BlockSpec((1, MID), const),
                pl.BlockSpec((MID, out_dim), const),
                pl.BlockSpec((1, out_dim), const),
            ],
            out_specs=pl.BlockSpec((n_pad_f, out_dim), const),
            compiler_params=pltpu.CompilerParams(
                dimension_semantics=("arbitrary",),
                vmem_limit_bytes=budget),
        )(xf, w1, gamma, beta, w2, b2)
        return y[:N].reshape(B, L, out_dim)

    # ---------------- Two-phase path (large N) ------------------------------
    # Output packing factor: p logical rows per 128-lane output row (no padding)
    # when out_dim divides 128; otherwise fall back to padding out_dim -> x128.
    if out_dim % LANE == 0:
        p, out_cols = 1, out_dim
    elif LANE % out_dim == 0 and LANE // out_dim <= 8:
        p, out_cols = LANE // out_dim, LANE
    else:
        p, out_cols = 1, _round_up(out_dim, LANE)

    row_quant = SUB * p
    csz = jnp.dtype(compute_dtype).itemsize
    out_bpr = (out_cols * 4) // p                       # output bytes / logical row
    # Conservative per-logical-row VMEM footprint (double-buffered streams + temps).
    per_row = 2 * (C * 4 + out_bpr) + 3 * MID * 4 + 2 * MID * csz + C * csz + 64

    if tile_rows is not None:
        tm = _round_down(int(tile_rows), row_quant)
    else:
        tm = min(_round_down(budget // per_row, row_quant), MAX_TILE_ROWS)
    tm = max(row_quant, min(tm, _round_up(N, row_quant)))

    n_pad = _round_up(N, tm)
    nt = n_pad // tm
    n_split = 2 if nt >= 2 else 1                       # v7x: 2 TCs on the stats pass
    npr = -(-nt // n_split)                             # tiles per split (ceil)

    if n_pad != N:
        x2d = jnp.pad(x2d, ((0, n_pad - N), (0, 0)))
    xp2 = x2d.reshape(n_pad // p, p * C)                # free, row-major reshape

    # ---- Phase 1: streamed BN statistics -----------------------------------
    sum_x, sum_g2 = pl.pallas_call(
        functools.partial(_stats_kernel, nt_total=nt),
        out_shape=(jax.ShapeDtypeStruct((n_split, SUB, C), jnp.float32),
                   jax.ShapeDtypeStruct((n_split, SUB, MID), jnp.float32)),
        grid=(n_split, npr),
        in_specs=[
            pl.BlockSpec((tm, C),
                         lambda c, i: (jnp.minimum(c * npr + i, nt - 1), 0)),
            pl.BlockSpec((C, MID), lambda c, i: (0, 0)),        # w1 resident
        ],
        out_specs=(pl.BlockSpec((1, SUB, C), lambda c, i: (c, 0, 0)),
                   pl.BlockSpec((1, SUB, MID), lambda c, i: (c, 0, 0))),
        compiler_params=pltpu.CompilerParams(
            dimension_semantics=("parallel", "arbitrary"),
            vmem_limit_bytes=budget),
    )(x2d, w1)

    # ---- Finalize stats, fold BN into fc1 (tiny f32 math in plain JAX) -----
    sx = jnp.sum(sum_x[:, 0, :], axis=0, keepdims=True)          # (1, C)
    sg2 = jnp.sum(sum_g2[:, 0, :], axis=0, keepdims=True)        # (1, MID)
    inv_n = 1.0 / N
    mean_g = (sx * inv_n) @ w1                                   # mean of x@w1
    # NOTE: E[g^2]-mean^2 in f32 can lose precision for huge N / large activations.
    var = jnp.maximum(sg2 * inv_n - mean_g * mean_g, 0.0)
    s = gamma * lax.rsqrt(var + BN_EPS)                          # (1, MID)
    t = beta - mean_g * s                                        # (1, MID)
    w1s = w1 * s                                                 # BN scale folded in

    if out_cols != p * out_dim:                                  # padded fallback
        w2u = jnp.pad(w2, ((0, 0), (0, out_cols - out_dim)))
        b2u = jnp.pad(b2, ((0, 0), (0, out_cols - out_dim)))
    else:
        w2u, b2u = w2, b2

    if p > 1:                                                    # block-diag packing
        eye = jnp.eye(p, dtype=jnp.float32)
        w1k = jnp.kron(eye, w1s).astype(compute_dtype)           # (p*C, p*MID)
        w2k = jnp.kron(eye, w2u.astype(jnp.float32)).astype(compute_dtype)
        tk = jnp.tile(t, (1, p))                                 # (1, p*MID)
        b2k = jnp.tile(b2u, (1, p))                              # (1, out_cols)
    else:
        w1k = w1s.astype(compute_dtype)
        w2k = w2u.astype(compute_dtype)
        tk, b2k = t, b2u

    # ---- Phase 2: fused MLP over independent row tiles ----------------------
    tm_p = tm // p
    const = lambda i: (0, 0)
    y = pl.pallas_call(
        functools.partial(_mlp_kernel, compute_dtype=compute_dtype),
        out_shape=jax.ShapeDtypeStruct((n_pad // p, out_cols), jnp.float32),
        grid=(nt,),
        in_specs=[
            pl.BlockSpec((tm_p, p * C), lambda i: (i, 0)),       # packed x (streamed)
            pl.BlockSpec((p * C, p * MID), const),               # fc1*BN weights
            pl.BlockSpec((1, p * MID), const),                   # BN shift
            pl.BlockSpec((p * MID, out_cols), const),            # fc2 weights
            pl.BlockSpec((1, out_cols), const),                  # fc2 bias
        ],
        out_specs=pl.BlockSpec((tm_p, out_cols), lambda i: (i, 0)),
        compiler_params=pltpu.CompilerParams(
            dimension_semantics=("parallel",),
            vmem_limit_bytes=budget),
    )(xp2, w1k, tk, w2k, b2k)

    y = y.reshape(n_pad, out_cols // p)[:N, :out_dim]
    return y.reshape(B, L, out_dim)


# --------------------------------------------------------------------------- #
# Params / reference
# --------------------------------------------------------------------------- #
def init_params(key, in_dim, out_dim):
    """PyTorch-style uniform Linear init; ones/zeros BN affine."""
    k1, k2, k3, k4 = jax.random.split(key, 4)
    bound1 = 1.0 / jnp.sqrt(in_dim)
    bound2 = 1.0 / jnp.sqrt(MID)
    w1 = jax.random.uniform(k1, (in_dim, MID), jnp.float32, -bound1, bound1)
    b1 = jax.random.uniform(k2, (1, MID), jnp.float32, -bound1, bound1)
    w2 = jax.random.uniform(k3, (MID, out_dim), jnp.float32, -bound2, bound2)
    b2 = jax.random.uniform(k4, (1, out_dim), jnp.float32, -bound2, bound2)
    return {"w1": w1, "b1": b1, "gamma": jnp.ones((1, MID), jnp.float32),
            "beta": jnp.zeros((1, MID), jnp.float32), "w2": w2, "b2": b2}


def reference_forward(x, params):
    """Pure-JAX reference matching PyTorch training-mode forward."""
    B, L, C = x.shape
    h = x.reshape(-1, C) @ params["w1"] + params["b1"]
    mean = jnp.mean(h, axis=0, keepdims=True)
    var = jnp.mean((h - mean) ** 2, axis=0, keepdims=True)   # biased variance
    h = (h - mean) / jnp.sqrt(var + BN_EPS) * params["gamma"] + params["beta"]
    h = jnp.maximum(h, 0.0)
    y = h @ params["w2"] + params["b2"]
    return y.reshape(B, L, -1)


if __name__ == "__main__":
    key = jax.random.PRNGKey(0)

    # Test 1: module-typical small shape -> fused single-call path (all f32).
    B, L, in_dim, out_dim = 2, 8, 16, 32
    k1, k2, key = jax.random.split(key, 3)
    x = jax.random.normal(k1, (B, L, in_dim), jnp.float32)
    params = init_params(k2, in_dim, out_dim)
    y = jax.block_until_ready(reconstruct_decoder_mlp(x, params))
    y_ref = reference_forward(x, params)
    assert y.shape == (B, L, out_dim)
    assert jnp.allclose(y, y_ref, atol=1e-4, rtol=1e-4), "mismatch (test 1)"

    # Test 2: two-phase path, f32 compute, packed output (p=4), multi-tile grid
    # with 2-way split and an odd tile count (exercises the clamp/guard).
    B2, L2 = 8, 640                       # N = 5120 rows > fused threshold
    k3, k4, key = jax.random.split(key, 3)
    x2 = jax.random.normal(k3, (B2, L2, in_dim), jnp.float32)
    params2 = init_params(k4, in_dim, out_dim)
    y2 = jax.block_until_ready(
        reconstruct_decoder_mlp(x2, params2, compute_dtype=jnp.float32,
                                tile_rows=1024))
    y2_ref = reference_forward(x2, params2)
    assert y2.shape == (B2, L2, out_dim)
    assert jnp.allclose(y2, y2_ref, atol=1e-3, rtol=1e-3), "mismatch (test 2)"

    # Test 3: two-phase path forced on a small N (fused_rows=0), default bf16
    # compute, out_dim=48 -> padded-output fallback, non-divisible N.
    B3, L3, out_dim3 = 4, 160, 48         # N = 640 rows
    k5, k6 = jax.random.split(key)
    x3 = jax.random.normal(k5, (B3, L3, in_dim), jnp.float32)
    params3 = init_params(k6, in_dim, out_dim3)
    y3 = jax.block_until_ready(
        reconstruct_decoder_mlp(x3, params3, tile_rows=256, fused_rows=0))
    y3_ref = reference_forward(x3, params3)
    assert y3.shape == (B3, L3, out_dim3)
    assert jnp.allclose(y3, y3_ref, atol=3e-2, rtol=3e-2), "mismatch (test 3)"

    print("KERNEL_OK")
</pallas_src>

<mosaic_0001>
module attributes {stable_mosaic.version = 11 : i64} {
  func.func @_fused_kernel(%arg0: i32, %arg1: memref<16x16xf32, #tpu.memory_space<vmem>>, %arg2: memref<16x128xf32, #tpu.memory_space<vmem>>, %arg3: memref<1x128xf32, #tpu.memory_space<vmem>>, %arg4: memref<1x128xf32, #tpu.memory_space<vmem>>, %arg5: memref<128x32xf32, #tpu.memory_space<vmem>>, %arg6: memref<1x32xf32, #tpu.memory_space<vmem>>, %arg7: memref<16x32xf32, #tpu.memory_space<vmem>>) attributes {dimension_semantics = [#tpu.dimension_semantics<arbitrary>], iteration_bounds = array<i64: 1>, scalar_prefetch = 0 : i64, scratch_operands = 0 : i64, tpu.core_type = #tpu.core_type<tc>, window_params = [{pipeline_mode = #tpu.pipeline_mode<synchronous>, transform_indices = @transform_0, window_bounds = array<i64: 16, 16>}, {pipeline_mode = #tpu.pipeline_mode<synchronous>, transform_indices = @transform_1, window_bounds = array<i64: 16, 128>}, {pipeline_mode = #tpu.pipeline_mode<synchronous>, transform_indices = @transform_2, window_bounds = array<i64: 1, 128>}, {pipeline_mode = #tpu.pipeline_mode<synchronous>, transform_indices = @transform_3, window_bounds = array<i64: 1, 128>}, {pipeline_mode = #tpu.pipeline_mode<synchronous>, transform_indices = @transform_4, window_bounds = array<i64: 128, 32>}, {pipeline_mode = #tpu.pipeline_mode<synchronous>, transform_indices = @transform_5, window_bounds = array<i64: 1, 32>}, {pipeline_mode = #tpu.pipeline_mode<synchronous>, transform_indices = @transform_6, window_bounds = array<i64: 16, 32>}]} {
    %c0 = arith.constant 0 : index
    %c0_0 = arith.constant 0 : index
    %0 = vector.load %arg1[%c0, %c0_0] : memref<16x16xf32, #tpu.memory_space<vmem>>, vector<16x16xf32>
    %c0_1 = arith.constant 0 : index
    %c0_2 = arith.constant 0 : index
    %1 = vector.load %arg2[%c0_1, %c0_2] : memref<16x128xf32, #tpu.memory_space<vmem>>, vector<16x128xf32>
    %cst = arith.constant dense<0.000000e+00> : vector<16x128xf32>
    %2 = tpu.matmul %0, %1, %cst {dimension_numbers = #tpu.dot_dimension_numbers<[1], [0], [0], [1], [0, 0, 1, 1], [], []>} : vector<16x16xf32>, vector<16x128xf32>, vector<16x128xf32> -> vector<16x128xf32>
    %cst_3 = arith.constant dense<0.000000e+00> : vector<128xf32>
    %3 = vector.multi_reduction <add>, %2, %cst_3 [0] : vector<16x128xf32> to vector<128xf32>
    %4 = vector.shape_cast %3 : vector<128xf32> to vector<1x128xf32>
    %cst_4 = arith.constant 6.250000e-02 : f32
    %5 = vector.broadcast %cst_4 : f32 to vector<1x128xf32>
    %6 = arith.mulf %4, %5 : vector<1x128xf32>
    %7 = arith.mulf %2, %2 : vector<16x128xf32>
    %cst_5 = arith.constant dense<0.000000e+00> : vector<128xf32>
    %8 = vector.multi_reduction <add>, %7, %cst_5 [0] : vector<16x128xf32> to vector<128xf32>
    %9 = vector.shape_cast %8 : vector<128xf32> to vector<1x128xf32>
    %cst_6 = arith.constant 6.250000e-02 : f32
    %10 = vector.broadcast %cst_6 : f32 to vector<1x128xf32>
    %11 = arith.mulf %9, %10 : vector<1x128xf32>
    %12 = arith.mulf %6, %6 : vector<1x128xf32>
    %13 = arith.subf %11, %12 : vector<1x128xf32>
    %cst_7 = arith.constant 0.000000e+00 : f32
    %14 = vector.broadcast %cst_7 : f32 to vector<1x128xf32>
    %15 = arith.maximumf %13, %14 : vector<1x128xf32>
    %c0_8 = arith.constant 0 : index
    %c0_9 = arith.constant 0 : index
    %16 = vector.load %arg3[%c0_8, %c0_9] : memref<1x128xf32, #tpu.memory_space<vmem>>, vector<1x128xf32>
    %cst_10 = arith.constant 1.000000e-03 : f32
    %17 = vector.broadcast %cst_10 : f32 to vector<1x128xf32>
    %18 = arith.addf %15, %17 : vector<1x128xf32>
    %19 = math.rsqrt %18 : vector<1x128xf32>
    %20 = arith.mulf %16, %19 : vector<1x128xf32>
    %c0_11 = arith.constant 0 : index
    %c0_12 = arith.constant 0 : index
    %21 = vector.load %arg4[%c0_11, %c0_12] : memref<1x128xf32, #tpu.memory_space<vmem>>, vector<1x128xf32>
    %22 = arith.mulf %6, %20 : vector<1x128xf32>
    %23 = arith.subf %21, %22 : vector<1x128xf32>
    %24 = vector.broadcast %20 : vector<1x128xf32> to vector<16x128xf32>
    %25 = arith.mulf %2, %24 : vector<16x128xf32>
    %26 = vector.broadcast %23 : vector<1x128xf32> to vector<16x128xf32>
    %27 = arith.addf %25, %26 : vector<16x128xf32>
    %cst_13 = arith.constant 0.000000e+00 : f32
    %28 = vector.broadcast %cst_13 : f32 to vector<16x128xf32>
    %29 = arith.maximumf %27, %28 : vector<16x128xf32>
    %c0_14 = arith.constant 0 : index
    %c0_15 = arith.constant 0 : index
    %30 = vector.load %arg5[%c0_14, %c0_15] : memref<128x32xf32, #tpu.memory_space<vmem>>, vector<128x32xf32>
    %cst_16 = arith.constant dense<0.000000e+00> : vector<16x32xf32>
    %31 = tpu.matmul %29, %30, %cst_16 {dimension_numbers = #tpu.dot_dimension_numbers<[1], [0], [0], [1], [0, 0, 1, 1], [], []>} : vector<16x128xf32>, vector<128x32xf32>, vector<16x32xf32> -> vector<16x32xf32>
    %c0_17 = arith.constant 0 : index
    %c0_18 = arith.constant 0 : index
    %32 = vector.load %arg6[%c0_17, %c0_18] : memref<1x32xf32, #tpu.memory_space<vmem>>, vector<1x32xf32>
    %33 = vector.broadcast %32 : vector<1x32xf32> to vector<16x32xf32>
    %34 = arith.addf %31, %33 : vector<16x32xf32>
    %c0_19 = arith.constant 0 : index
    %c0_20 = arith.constant 0 : index
    %35 = vector.load %arg7[%c0_19, %c0_20] : memref<16x32xf32, #tpu.memory_space<vmem>>, vector<16x32xf32>
    tpu.vector_store %arg7[%c0_19, %c0_20], %34 {strides = array<i32>} : memref<16x32xf32, #tpu.memory_space<vmem>>, vector<16x32xf32>,
    return
  }
  func.func @transform_0(%arg0: i32) -> (i32, i32) {
    %c0_i32 = arith.constant 0 : i32
    %c0_i32_0 = arith.constant 0 : i32
    %c0_i32_1 = arith.constant 0 : i32
    return %c0_i32, %c0_i32_0 : i32, i32
  }
  func.func @transform_1(%arg0: i32) -> (i32, i32) {
    %c0_i32 = arith.constant 0 : i32
    %c0_i32_0 = arith.constant 0 : i32
    %c0_i32_1 = arith.constant 0 : i32
    return %c0_i32, %c0_i32_0 : i32, i32
  }
  func.func @transform_2(%arg0: i32) -> (i32, i32) {
    %c0_i32 = arith.constant 0 : i32
    %c0_i32_0 = arith.constant 0 : i32
    %c0_i32_1 = arith.constant 0 : i32
    return %c0_i32, %c0_i32_0 : i32, i32
  }
  func.func @transform_3(%arg0: i32) -> (i32, i32) {
    %c0_i32 = arith.constant 0 : i32
    %c0_i32_0 = arith.constant 0 : i32
    %c0_i32_1 = arith.constant 0 : i32
    return %c0_i32, %c0_i32_0 : i32, i32
  }
  func.func @transform_4(%arg0: i32) -> (i32, i32) {
    %c0_i32 = arith.constant 0 : i32
    %c0_i32_0 = arith.constant 0 : i32
    %c0_i32_1 = arith.constant 0 : i32
    return %c0_i32, %c0_i32_0 : i32, i32
  }
  func.func @transform_5(%arg0: i32) -> (i32, i32) {
    %c0_i32 = arith.constant 0 : i32
    %c0_i32_0 = arith.constant 0 : i32
    %c0_i32_1 = arith.constant 0 : i32
    return %c0_i32, %c0_i32_0 : i32, i32
  }
  func.func @transform_6(%arg0: i32) -> (i32, i32) {
    %c0_i32 = arith.constant 0 : i32
    %c0_i32_0 = arith.constant 0 : i32
    %c0_i32_1 = arith.constant 0 : i32
    return %c0_i32, %c0_i32_0 : i32, i32
  }
}

</mosaic_0001>

<llo_original>
// kernel: reconstruct_decoder_mlp.1
$region0: #{reconstruct_decoder_mlp.1}
  #allocation0 [shape = 'u32[]', space=smem, size = 0x4, offset = 0x4, fixed_abs, tag = 'smem constant byte address 0x4 - core index']
  #allocation1 [shape = 'u32[144,128]{1,0:T(1,128)}', space=vmem, size = 0x12000, scoped, tag = 'internal scratch']
  %s0 = inlined_call_operand.vmem [shape: f32[16,16], index: 0, kind: input, shape index: {}]
  %s1 = inlined_call_operand.vmem [shape: f32[16,128], index: 1, kind: input, shape index: {}]
  %s2 = inlined_call_operand.vmem [shape: f32[1,128], index: 2, kind: input, shape index: {}]
  %s3 = inlined_call_operand.vmem [shape: f32[1,128], index: 3, kind: input, shape index: {}]
  %s4 = inlined_call_operand.vmem [shape: f32[128,32], index: 4, kind: input, shape index: {}]
  %s5 = inlined_call_operand.vmem [shape: f32[1,32], index: 5, kind: input, shape index: {}]
  %s6 = inlined_call_operand.hbm [shape: f32[16,32], index: 6, kind: output, shape index: {}]
  %s7 = sld [smem:[#allocation0]]
  $region34: #{reconstruct_decoder_mlp.1} parent=0
    _
  %s9 = ssub.s32 1, %s7
  %s10 = scalar_select 0, %s9, %s7
  $region1: #{reconstruct_decoder_mlp.1} parent=0
    #allocation2 [shape = 'u8[8192]{0}', space=vmem, size = 0x2000, scoped, tag = 'output window, operand 0, single buffered']
    #allocation3 [shape = 's32[1]{0}', space=sflag, size = 0x4, scoped, tag = 'scoped memory for reconstruct_decoder_mlp.1']
    %11 = vsyncpa [#allocation3], 0
    // Predicated region
    $region2: #{reconstruct_decoder_mlp.1} parent=1 // pred_check
      _
    $region3: #{reconstruct_decoder_mlp.1} parent=1 // pred_check_branch
      %13 = sbr.rel (0) target = $region5
    $region4: #{reconstruct_decoder_mlp.1} parent=1 // pred_region
      _
    $region5: #{reconstruct_decoder_mlp.1} parent=1 // pred_fallthru
      _
    // Predicated region
    $region6: #{reconstruct_decoder_mlp.1} parent=1 // pred_check
      _
    $region7: #{reconstruct_decoder_mlp.1} parent=1 // pred_check_branch
      %15 = sbr.rel (0) target = $region9
    $region8: #{reconstruct_decoder_mlp.1} parent=1 // pred_region
      _
    $region9: #{reconstruct_decoder_mlp.1} parent=1 // pred_fallthru
      _
    // Predicated region
    $region10: #{reconstruct_decoder_mlp.1} parent=1 // pred_check
      _
    $region11: #{reconstruct_decoder_mlp.1} parent=1 // pred_check_branch
      %17 = sbr.rel (0) target = $region13
    $region12: #{reconstruct_decoder_mlp.1} parent=1 // pred_region
      _
    $region13: #{reconstruct_decoder_mlp.1} parent=1 // pred_fallthru
      _
    // Predicated region
    $region14: #{reconstruct_decoder_mlp.1} parent=1 // pred_check
      _
    $region15: #{reconstruct_decoder_mlp.1} parent=1 // pred_check_branch
      %19 = sbr.rel (0) target = $region17
    $region16: #{reconstruct_decoder_mlp.1} parent=1 // pred_region
      _
    $region17: #{reconstruct_decoder_mlp.1} parent=1 // pred_fallthru
      _
    // Predicated region
    $region18: #{reconstruct_decoder_mlp.1} parent=1 // pred_check
      _
    $region19: #{reconstruct_decoder_mlp.1} parent=1 // pred_check_branch
      %21 = sbr.rel (0) target = $region21
    $region20: #{reconstruct_decoder_mlp.1} parent=1 // pred_region
      _
    $region21: #{reconstruct_decoder_mlp.1} parent=1 // pred_fallthru
      _
    // Predicated region
    $region22: #{reconstruct_decoder_mlp.1} parent=1 // pred_check
      _
    $region23: #{reconstruct_decoder_mlp.1} parent=1 // pred_check_branch
      %23 = sbr.rel (0) target = $region25
    $region24: #{reconstruct_decoder_mlp.1} parent=1 // pred_region
      _
    $region25: #{reconstruct_decoder_mlp.1} parent=1 // pred_fallthru
      _
    %v24 = vld [vmem:[%s0] sm:$0xff]
    %v25 = vld [vmem:[%s0 + $0x8] sm:$0xff]
    %v26 = vld [vmem:[%s1] sm:$0xff]
    %v27 = vld [vmem:[%s1 + $0x8] sm:$0xff]
    %vm28 = vcmask 130048
    %v30 = vsel %vm28, %v24, 0
    %v33 = vsel %vm28, %v25, 0
    %35 = vmatprep.subr.mxu0 0.0
    %36 = vmatpush1.msra.mxu0 %v26
    %37 = vmatprep.subr.mxu0 0.0
    %38 = vmatpush1.msra.mxu0 %v27
    %39 = vmatprep.subr.mxu0 0.0
    %40 = vmatpush1.msra.mxu0 0.0
    %41 = vmatprep.subr.mxu0 0.0
    %42 = vmatpush1.msra.mxu0 0.0
    %43 = vmatprep.subr.mxu0 0.0
    %44 = vmatpush1.msra.mxu0 0.0
    %45 = vmatprep.subr.mxu0 0.0
    %46 = vmatpush1.msra.mxu0 0.0
    %47 = vmatprep.subr.mxu0 0.0
    %48 = vmatpush1.msra.mxu0 0.0
    %49 = vmatprep.subr.mxu0 0.0
    %50 = vmatpush1.msra.mxu0 0.0
    %51 = vmatprep.subr.mxu0 0.0
    %52 = vmatpush1.msra.mxu0 0.0
    %53 = vmatprep.subr.mxu0 0.0
    %54 = vmatpush1.msra.mxu0 0.0
    %55 = vmatprep.subr.mxu0 0.0
    %56 = vmatpush1.msra.mxu0 0.0
    %57 = vmatprep.subr.mxu0 0.0
    %58 = vmatpush1.msra.mxu0 0.0
    %59 = vmatprep.subr.mxu0 0.0
    %60 = vmatpush1.msra.mxu0 0.0
    %61 = vmatprep.subr.mxu0 0.0
    %62 = vmatpush1.msra.mxu0 0.0
    %63 = vmatprep.subr.mxu0 0.0
    %64 = vmatpush1.msra.mxu0 0.0
    %65 = vmatprep.subr.mxu0 0.0
    %66 = vmatpush1.msra.mxu0 0.0
    %67 = vmatprep.subr.mxu0 0.0
    %68 = vmatpush1.msra.mxu0 0.0
    %69 = vmatprep.subr.mxu0 0.0
    %70 = vmatpush1.msra.mxu0 0.0
    %71 = vmatprep.subr.mxu0 0.0
    %72 = vmatpush1.msra.mxu0 0.0
    %73 = vmatprep.subr.mxu0 0.0
    %74 = vmatpush1.msra.mxu0 0.0
    %75 = vmatprep.subr.mxu0 0.0
    %76 = vmatpush1.msra.mxu0 0.0
    %77 = vmatprep.subr.mxu0 0.0
    %78 = vmatpush1.msra.mxu0 0.0
    %79 = vmatprep.subr.mxu0 0.0
    %80 = vmatpush1.msra.mxu0 0.0
    %81 = vmatprep.subr.mxu0 0.0
    %82 = vmatpush1.msra.mxu0 0.0
    %83 = vmatprep.subr.mxu0 0.0
    %84 = vmatpush1.msra.mxu0 0.0
    %85 = vmatprep.subr.mxu0 0.0
    %86 = vmatpush1.msra.mxu0 0.0
    %87 = vmatprep.subr.mxu0 0.0
    %88 = vmatpush1.msra.mxu0 0.0
    %89 = vmatprep.subr.mxu0 0.0
    %90 = vmatpush1.msra.mxu0 0.0
    %91 = vmatprep.subr.mxu0 0.0
    %92 = vmatpush1.msra.mxu0 0.0
    %93 = vmatprep.subr.mxu0 0.0
    %94 = vmatpush1.msra.mxu0 0.0
    %95 = vmatprep.subr.mxu0 0.0
    %96 = vmatpush1.msra.mxu0 0.0
    %97 = vmatprep.subr.mxu0 0.0
    %98 = vmatpush1.msra.mxu0 0.0
    %99 = vmatprep.mubr.f32.mxu0 0.0
    %100 = vmatmul.mubr.f32.gmra.mrb[0].mxu0 %v30
    %v101 = vpop.f32.mrb[0].mxu0
    %v102 = vadd.f32 0.0, %v101
    %v103 = vpop.f32.mrb[0].mxu0
    %104 = vmatprep.mubr.f32.mxu0 0.0
    %105 = vmatmul.mubr.f32.gmra.mrb[0].mxu0 %v33
    %v106 = vpop.f32.mrb[0].mxu0
    %v107 = vadd.f32 0.0, %v106
    %v108 = vpop.f32.mrb[0].mxu0
    %109 = vdwg.mxu0
    %v110 = vadd.f32 %v102, %v107
    %v111 = vrot.slane %v110, 4
    %v112 = vadd.f32 %v110, %v111
    %v113 = vrot.slane %v112, 2
    %v114 = vadd.f32 %v112, %v113
    %v115 = vrot.slane %v114, 1
    %v116 = vadd.f32 %v114, %v115
    %v117 = vmul.f32 %v116, 0.0625
    %v118 = vmul.f32 %v102, %v102
    %v119 = vmul.f32 %v107, %v107
    %v120 = vadd.f32 %v118, %v119
    %v121 = vrot.slane %v120, 4
    %v122 = vadd.f32 %v120, %v121
    %v123 = vrot.slane %v122, 2
    %v124 = vadd.f32 %v122, %v123
    %v125 = vrot.slane %v124, 1
    %v126 = vadd.f32 %v124, %v125
    %v127 = vmul.f32 %v126, 0.0625
    %v128 = vmul.f32 %v117, %v117
    %v129 = vsub.f32 %v127, %v128
    %v130 = vmax.f32 %v129, 0.0
    %v131 = vld [vmem:[%s2] sm:$0x1]
    %v132 = vadd.f32 %v130, 0.001
    %v133 = vrsqrt.pop %v132
    %v134 = vmul.f32 %v131, %v133
    %v135 = vld [vmem:[%s3] sm:$0x1]
    %v136 = vmul.f32 %v117, %v134
    %v137 = vsub.f32 %v135, %v136
    %v139 = vlaneseq
    %v140 = vshrl.u32 %v139, 7
    %v141 = vsub.s32 0, %v140
    %v142 = vrot.slane %v134, %v141
    %v144 = vmul.f32 %v102, %v142
    %v145 = vmul.f32 %v107, %v142
    %v147 = vlaneseq
    %v148 = vshrl.u32 %v147, 7
    %v149 = vsub.s32 0, %v148
    %v150 = vrot.slane %v137, %v149
    %v152 = vadd.f32 %v144, %v150
    %v153 = vadd.f32 %v145, %v150
    %v154 = vmax.f32 %v152, 0.0
    %v155 = vmax.f32 %v153, 0.0
    %v156 = vld [vmem:[%s4] sm:$0xff]
    %v157 = vld [vmem:[%s4 + $0x8] sm:$0xff]
    %v158 = vld [vmem:[%s4 + $0x10] sm:$0xff]
    %v159 = vld [vmem:[%s4 + $0x18] sm:$0xff]
    %v160 = vld [vmem:[%s4 + $0x20] sm:$0xff]
    %v161 = vld [vmem:[%s4 + $0x28] sm:$0xff]
    %v162 = vld [vmem:[%s4 + $0x30] sm:$0xff]
    %v163 = vld [vmem:[%s4 + $0x38] sm:$0xff]
    %v164 = vld [vmem:[%s4 + $0x40] sm:$0xff]
    %v165 = vld [vmem:[%s4 + $0x48] sm:$0xff]
    %v166 = vld [vmem:[%s4 + $0x50] sm:$0xff]
    %v167 = vld [vmem:[%s4 + $0x58] sm:$0xff]
    %v168 = vld [vmem:[%s4 + $0x60] sm:$0xff]
    %v169 = vld [vmem:[%s4 + $0x68] sm:$0xff]
    %v170 = vld [vmem:[%s4 + $0x70] sm:$0xff]
    %v171 = vld [vmem:[%s4 + $0x78] sm:$0xff]
    %v172 = vld [vmem:[%s5] sm:$0x1]
    %v174 = vlaneseq
    %v175 = vshrl.u32 %v174, 7
    %v176 = vsub.s32 0, %v175
    %v177 = vrot.slane %v172, %v176
    %179 = vmatprep.subr.mxu0 0.0
    %180 = vmatpush1.msra.mxu0 %v156
    %181 = vmatprep.subr.mxu0 0.0
    %182 = vmatpush1.msra.mxu0 %v157
    %183 = vmatprep.subr.mxu0 0.0
    %184 = vmatpush1.msra.mxu0 %v158
    %185 = vmatprep.subr.mxu0 0.0
    %186 = vmatpush1.msra.mxu0 %v159
    %187 = vmatprep.subr.mxu0 0.0
    %188 = vmatpush1.msra.mxu0 %v160
    %189 = vmatprep.subr.mxu0 0.0
    %190 = vmatpush1.msra.mxu0 %v161
    %191 = vmatprep.subr.mxu0 0.0
    %192 = vmatpush1.msra.mxu0 %v162
    %193 = vmatprep.subr.mxu0 0.0
    %194 = vmatpush1.msra.mxu0 %v163
    %195 = vmatprep.subr.mxu0 0.0
    %196 = vmatpush1.msra.mxu0 %v164
    %197 = vmatprep.subr.mxu0 0.0
    %198 = vmatpush1.msra.mxu0 %v165
    %199 = vmatprep.subr.mxu0 0.0
    %200 = vmatpush1.msra.mxu0 %v166
    %201 = vmatprep.subr.mxu0 0.0
    %202 = vmatpush1.msra.mxu0 %v167
    %203 = vmatprep.subr.mxu0 0.0
    %204 = vmatpush1.msra.mxu0 %v168
    %205 = vmatprep.subr.mxu0 0.0
    %206 = vmatpush1.msra.mxu0 %v169
    %207 = vmatprep.subr.mxu0 0.0
    %208 = vmatpush1.msra.mxu0 %v170
    %209 = vmatprep.subr.mxu0 0.0
    %210 = vmatpush1.msra.mxu0 %v171
    %211 = vmatprep.subr.mxu0 0.0
    %212 = vmatpush1.msra.mxu0 0.0
    %213 = vmatprep.subr.mxu0 0.0
    %214 = vmatpush1.msra.mxu0 0.0
    %215 = vmatprep.subr.mxu0 0.0
    %216 = vmatpush1.msra.mxu0 0.0
    %217 = vmatprep.subr.mxu0 0.0
    %218 = vmatpush1.msra.mxu0 0.0
    %219 = vmatprep.subr.mxu0 0.0
    %220 = vmatpush1.msra.mxu0 0.0
    %221 = vmatprep.subr.mxu0 0.0
    %222 = vmatpush1.msra.mxu0 0.0
    %223 = vmatprep.subr.mxu0 0.0
    %224 = vmatpush1.msra.mxu0 0.0
    %225 = vmatprep.subr.mxu0 0.0
    %226 = vmatpush1.msra.mxu0 0.0
    %227 = vmatprep.subr.mxu0 0.0
    %228 = vmatpush1.msra.mxu0 0.0
    %229 = vmatprep.subr.mxu0 0.0
    %230 = vmatpush1.msra.mxu0 0.0
    %231 = vmatprep.subr.mxu0 0.0
    %232 = vmatpush1.msra.mxu0 0.0
    %233 = vmatprep.subr.mxu0 0.0
    %234 = vmatpush1.msra.mxu0 0.0
    %235 = vmatprep.subr.mxu0 0.0
    %236 = vmatpush1.msra.mxu0 0.0
    %237 = vmatprep.subr.mxu0 0.0
    %238 = vmatpush1.msra.mxu0 0.0
    %239 = vmatprep.subr.mxu0 0.0
    %240 = vmatpush1.msra.mxu0 0.0
    %241 = vmatprep.subr.mxu0 0.0
    %242 = vmatpush1.msra.mxu0 0.0
    %243 = vmatprep.mubr.f32.mxu0 0.0
    %244 = vmatmul.mubr.f32.gmra.mrb[0].mxu0 %v154
    %v245 = vpop.f32.mrb[0].mxu0
    %v246 = vadd.f32 %v177, %v245
    %v247 = vpop.f32.mrb[0].mxu0
    %248 = vmatprep.mubr.f32.mxu0 0.0
    %249 = vmatmul.mubr.f32.gmra.mrb[0].mxu0 %v155
    %v250 = vpop.f32.mrb[0].mxu0
    %v251 = vadd.f32 %v177, %v250
    %v252 = vpop.f32.mrb[0].mxu0
    %253 = vdwg.mxu0
    %vm254 = vcmask 261120
    %255 = vst.msk [vmem:[#allocation2] sm:$0xff] %vm254, %v246
    %256 = vst.msk [vmem:[#allocation2 + $0x8] sm:$0xff] %vm254, %v251
    // Predicated region
    $region26: #{reconstruct_decoder_mlp.1} parent=1 // pred_check
      _
    $region27: #{reconstruct_decoder_mlp.1} parent=1 // pred_check_branch
      %258 = sbr.rel (0) target = $region29
    $region28: #{reconstruct_decoder_mlp.1} parent=1 // pred_region
      %s260 = ssub.s32 256, 256
      %261 = vsyncadd [#allocation3], %s260
      %s262 = sshll.u32 [#allocation2], 4
      %s263 = int_to_ptr.vmem [resolvable:$true] %s262
      %268 = dma.vmem_to_hbm [thread:$0]  %s263, 256, %s6, [#allocation3], 128, 128, 8
    $region29: #{reconstruct_decoder_mlp.1} parent=1 // pred_fallthru
      _
    // Predicated region
    $region30: #{reconstruct_decoder_mlp.1} parent=1 // pred_check
      _
    $region31: #{reconstruct_decoder_mlp.1} parent=1 // pred_check_branch
      %270 = sbr.rel (0) target = $region33
    $region32: #{reconstruct_decoder_mlp.1} parent=1 // pred_region
      %271 = dma.done [#allocation3], 256
    $region33: #{reconstruct_decoder_mlp.1} parent=1 // pred_fallthru
      _
    %272 = vsyncpa [#allocation3], 1

</llo_original>
